<compile_context>
chip_gen: v7x
topology: tpu7x:2x2x1
jax: 0.10.0
libtpu: 0.0.40
codegen_flags: <defaults>
</compile_context>

<pallas_src>
import math
import jax
import jax.numpy as jnp
from jax.experimental import pallas as pl
from jax.experimental.pallas import tpu as pltpu


def _matmul_bias_kernel(x_ref, y_ref, bias_ref, o_ref):
    # One MXU matmul for the runtime activations (f32 accumulation) ...
    mm2 = jnp.dot(x_ref[...], y_ref[...], preferred_element_type=jnp.float32)
    # ... plus the const-eval'ed c1@c2 bias (already f32); cast once at the store.
    o_ref[...] = (mm2 + bias_ref[...]).astype(o_ref.dtype)


class ConstEvalPassMatmul:
    """JAX/Pallas equivalent of ModelConstEvalPass (operator = matmul)."""

    def __init__(self, c1, c2):
        M, K = c1.shape
        K2, N = c2.shape
        assert K == K2
        self.M, self.K, self.N = M, K, N

        # Const-eval: mm1 = c1 @ c2 computed ONCE here, in plain JAX, kept in f32
        # (it is only M x N) so the constant term is never double-rounded.
        self.bias_f32 = jnp.dot(c1, c2, preferred_element_type=jnp.float32)

        # Whole-array VMEM blocks, no grid: nothing to pipeline at these shapes.
        vmem_spec = pl.BlockSpec(memory_space=pltpu.MemorySpace.VMEM)
        self._call = pl.pallas_call(
            _matmul_bias_kernel,
            out_shape=jax.ShapeDtypeStruct((M, N), c1.dtype),
            in_specs=[vmem_spec, vmem_spec, vmem_spec],
            out_specs=vmem_spec,
        )

    def __call__(self, x, y):
        M, K, N = self.M, self.K, self.N
        assert x.shape == (M, K) and y.shape == (K, N)
        return self._call(x, y, self.bias_f32)


def _make_constant(shape, seed, value_range, dtype=jnp.float32):
    """Deterministic stand-in for TensorUtils.create_torch_constant."""
    lo, hi = value_range
    key = jax.random.PRNGKey(seed)
    return jax.random.uniform(key, shape, dtype=dtype, minval=lo, maxval=hi)


if __name__ == "__main__":
    # Shapes consistent with a 2-D matmul operand pair.
    shape_1 = (16, 32)   # c1 / x : [M, K]
    shape_2 = (32, 64)   # c2 / y : [K, N]
    value_range = (-1.0, 1.0)
    dtype = jnp.float32

    # Constants, seeded the same way the module seeds them
    # (prod(shape_1) and sum(shape_2)).
    c1 = _make_constant(shape_1, math.prod(shape_1), value_range, dtype)
    c2 = _make_constant(shape_2, sum(shape_2), value_range, dtype)

    # Runtime activations.
    key = jax.random.PRNGKey(0)
    kx, ky = jax.random.split(key)
    x = jax.random.uniform(kx, shape_1, dtype=dtype, minval=-1.0, maxval=1.0)
    y = jax.random.uniform(ky, shape_2, dtype=dtype, minval=-1.0, maxval=1.0)

    model = ConstEvalPassMatmul(c1, c2)
    out = model(x, y)
    out = jax.block_until_ready(out)

    # Reference check in plain JAX.
    ref = c1 @ c2 + x @ y
    assert out.shape == ref.shape
    assert jnp.allclose(out, ref, atol=1e-5, rtol=1e-5)

    print("KERNEL_OK")
</pallas_src>

<mosaic_0001>
module attributes {stable_mosaic.version = 11 : i64} {
  func.func @_matmul_bias_kernel(%arg0: memref<16x32xf32, #tpu.memory_space<vmem>>, %arg1: memref<32x64xf32, #tpu.memory_space<vmem>>, %arg2: memref<16x64xf32, #tpu.memory_space<vmem>>, %arg3: memref<16x64xf32, #tpu.memory_space<vmem>>) attributes {dimension_semantics = [], scalar_prefetch = 0 : i64, scratch_operands = 0 : i64, tpu.core_type = #tpu.core_type<tc>} {
    %c0 = arith.constant 0 : index
    %c0_0 = arith.constant 0 : index
    %0 = vector.load %arg0[%c0, %c0_0] : memref<16x32xf32, #tpu.memory_space<vmem>>, vector<16x32xf32>
    %c0_1 = arith.constant 0 : index
    %c0_2 = arith.constant 0 : index
    %1 = vector.load %arg1[%c0_1, %c0_2] : memref<32x64xf32, #tpu.memory_space<vmem>>, vector<32x64xf32>
    %cst = arith.constant dense<0.000000e+00> : vector<16x64xf32>
    %2 = tpu.matmul %0, %1, %cst {dimension_numbers = #tpu.dot_dimension_numbers<[1], [0], [0], [1], [0, 0, 1, 1], [], []>} : vector<16x32xf32>, vector<32x64xf32>, vector<16x64xf32> -> vector<16x64xf32>
    %c0_3 = arith.constant 0 : index
    %c0_4 = arith.constant 0 : index
    %3 = vector.load %arg2[%c0_3, %c0_4] : memref<16x64xf32, #tpu.memory_space<vmem>>, vector<16x64xf32>
    %4 = arith.addf %2, %3 : vector<16x64xf32>
    %c0_5 = arith.constant 0 : index
    %c0_6 = arith.constant 0 : index
    %5 = vector.load %arg3[%c0_5, %c0_6] : memref<16x64xf32, #tpu.memory_space<vmem>>, vector<16x64xf32>
    tpu.vector_store %arg3[%c0_5, %c0_6], %4 {strides = array<i32>} : memref<16x64xf32, #tpu.memory_space<vmem>>, vector<16x64xf32>,
    return
  }
}

</mosaic_0001>

<llo_original>
// kernel: tpu_custom_call.1
$region0: #{tpu_custom_call.1}
  #allocation0 [shape = 'u32[]', space=smem, size = 0x4, offset = 0x4, fixed_abs, tag = 'smem constant byte address 0x4 - core index']
  #allocation1 [shape = 'u32[144,128]{1,0:T(1,128)}', space=vmem, size = 0x12000, scoped, tag = 'internal scratch']
  %s0 = inlined_call_operand.hbm [shape: f32[16,32], index: 0, kind: input, shape index: {}]
  %s1 = inlined_call_operand.hbm [shape: f32[32,64], index: 1, kind: input, shape index: {}]
  %s2 = inlined_call_operand.hbm [shape: f32[16,64], index: 2, kind: input, shape index: {}]
  %s3 = inlined_call_operand.hbm [shape: f32[16,64], index: 3, kind: output, shape index: {}]
  %s4 = sld [smem:[#allocation0]]
  $region34: #{tpu_custom_call.1} parent=0
    _
  %s6 = ssub.s32 1, %s4
  %s7 = scalar_select 0, %s6, %s4
  $region1: #{tpu_custom_call.1} parent=0
    #allocation2 [shape = 'u8[8192]{0}', space=vmem, size = 0x2000, scoped, tag = 'input window, operand 0, single buffered']
    #allocation3 [shape = 's32[1]{0}', space=sflag, size = 0x4, scoped, tag = 'scoped memory for tpu_custom_call.1']
    #allocation4 [shape = 's32[1]{0}', space=sflag, size = 0x4, scoped, tag = 'scoped memory for tpu_custom_call.1']
    #allocation5 [shape = 'u8[16384]{0}', space=vmem, size = 0x4000, scoped, tag = 'input window, operand 1, single buffered']
    #allocation6 [shape = 's32[1]{0}', space=sflag, size = 0x4, scoped, tag = 'scoped memory for tpu_custom_call.1']
    #allocation7 [shape = 'u8[8192]{0}', space=vmem, size = 0x2000, scoped, tag = 'input window, operand 2, single buffered']
    #allocation8 [shape = 'u8[8192]{0}', space=vmem, size = 0x2000, scoped, tag = 'output window, operand 0, single buffered']
    %8 = vsyncpa [#allocation3], 0
    %9 = vsyncpa [#allocation6], 0
    %10 = vsyncpa [#allocation4], 0
    // Predicated region
    $region2: #{tpu_custom_call.1} parent=1 // pred_check
      _
    $region3: #{tpu_custom_call.1} parent=1 // pred_check_branch
      %12 = sbr.rel (0) target = $region5
    $region4: #{tpu_custom_call.1} parent=1 // pred_region
      %s14 = ssub.s32 256, 256
      %15 = vsyncadd [#allocation3], %s14
      %s16 = sshll.u32 [#allocation2], 4
      %s17 = int_to_ptr.vmem [resolvable:$true] %s16
      %22 = dma.hbm_to_vmem [thread:$0]  %s0, 256, %s17, [#allocation3], 128, 128, 8
    $region5: #{tpu_custom_call.1} parent=1 // pred_fallthru
      _
    // Predicated region
    $region6: #{tpu_custom_call.1} parent=1 // pred_check
      _
    $region7: #{tpu_custom_call.1} parent=1 // pred_check_branch
      %24 = sbr.rel (0) target = $region9
    $region8: #{tpu_custom_call.1} parent=1 // pred_region
      %s26 = ssub.s32 512, 512
      %27 = vsyncadd [#allocation6], %s26
      %s28 = sshll.u32 [#allocation5], 4
      %s29 = int_to_ptr.vmem [resolvable:$true] %s28
      %34 = dma.hbm_to_vmem [thread:$0]  %s1, 512, %s29, [#allocation6], 128, 128, 8
    $region9: #{tpu_custom_call.1} parent=1 // pred_fallthru
      _
    // Predicated region
    $region10: #{tpu_custom_call.1} parent=1 // pred_check
      _
    $region11: #{tpu_custom_call.1} parent=1 // pred_check_branch
      %36 = sbr.rel (0) target = $region13
    $region12: #{tpu_custom_call.1} parent=1 // pred_region
      %s38 = ssub.s32 256, 256
      %39 = vsyncadd [#allocation6], %s38
      %s40 = sshll.u32 [#allocation7], 4
      %s41 = int_to_ptr.vmem [resolvable:$true] %s40
      %46 = dma.hbm_to_vmem [thread:$0]  %s2, 256, %s41, [#allocation6], 128, 128, 8
    $region13: #{tpu_custom_call.1} parent=1 // pred_fallthru
      _
    // Predicated region
    $region14: #{tpu_custom_call.1} parent=1 // pred_check
      _
    $region15: #{tpu_custom_call.1} parent=1 // pred_check_branch
      %48 = sbr.rel (0) target = $region17
    $region16: #{tpu_custom_call.1} parent=1 // pred_region
      %49 = dma.done [#allocation3], 256
    $region17: #{tpu_custom_call.1} parent=1 // pred_fallthru
      _
    // Predicated region
    $region18: #{tpu_custom_call.1} parent=1 // pred_check
      _
    $region19: #{tpu_custom_call.1} parent=1 // pred_check_branch
      %51 = sbr.rel (0) target = $region21
    $region20: #{tpu_custom_call.1} parent=1 // pred_region
      %52 = dma.done [#allocation6], 512
    $region21: #{tpu_custom_call.1} parent=1 // pred_fallthru
      _
    // Predicated region
    $region22: #{tpu_custom_call.1} parent=1 // pred_check
      _
    $region23: #{tpu_custom_call.1} parent=1 // pred_check_branch
      %54 = sbr.rel (0) target = $region25
    $region24: #{tpu_custom_call.1} parent=1 // pred_region
      %55 = dma.done [#allocation6], 256
    $region25: #{tpu_custom_call.1} parent=1 // pred_fallthru
      _
    %v56 = vld [vmem:[#allocation2] sm:$0xff]
    %v57 = vld [vmem:[#allocation2 + $0x8] sm:$0xff]
    %v58 = vld [vmem:[#allocation5] sm:$0xff]
    %v59 = vld [vmem:[#allocation5 + $0x8] sm:$0xff]
    %v60 = vld [vmem:[#allocation5 + $0x10] sm:$0xff]
    %v61 = vld [vmem:[#allocation5 + $0x18] sm:$0xff]
    %v62 = vld [vmem:[#allocation7] sm:$0xff]
    %v63 = vld [vmem:[#allocation7 + $0x8] sm:$0xff]
    %vm64 = vcmask 261120
    %v66 = vsel %vm64, %v56, 0
    %v69 = vsel %vm64, %v57, 0
    %71 = vmatprep.subr.mxu0 0.0
    %72 = vmatpush1.msra.mxu0 %v58
    %73 = vmatprep.subr.mxu0 0.0
    %74 = vmatpush1.msra.mxu0 %v59
    %75 = vmatprep.subr.mxu0 0.0
    %76 = vmatpush1.msra.mxu0 %v60
    %77 = vmatprep.subr.mxu0 0.0
    %78 = vmatpush1.msra.mxu0 %v61
    %79 = vmatprep.subr.mxu0 0.0
    %80 = vmatpush1.msra.mxu0 0.0
    %81 = vmatprep.subr.mxu0 0.0
    %82 = vmatpush1.msra.mxu0 0.0
    %83 = vmatprep.subr.mxu0 0.0
    %84 = vmatpush1.msra.mxu0 0.0
    %85 = vmatprep.subr.mxu0 0.0
    %86 = vmatpush1.msra.mxu0 0.0
    %87 = vmatprep.subr.mxu0 0.0
    %88 = vmatpush1.msra.mxu0 0.0
    %89 = vmatprep.subr.mxu0 0.0
    %90 = vmatpush1.msra.mxu0 0.0
    %91 = vmatprep.subr.mxu0 0.0
    %92 = vmatpush1.msra.mxu0 0.0
    %93 = vmatprep.subr.mxu0 0.0
    %94 = vmatpush1.msra.mxu0 0.0
    %95 = vmatprep.subr.mxu0 0.0
    %96 = vmatpush1.msra.mxu0 0.0
    %97 = vmatprep.subr.mxu0 0.0
    %98 = vmatpush1.msra.mxu0 0.0
    %99 = vmatprep.subr.mxu0 0.0
    %100 = vmatpush1.msra.mxu0 0.0
    %101 = vmatprep.subr.mxu0 0.0
    %102 = vmatpush1.msra.mxu0 0.0
    %103 = vmatprep.subr.mxu0 0.0
    %104 = vmatpush1.msra.mxu0 0.0
    %105 = vmatprep.subr.mxu0 0.0
    %106 = vmatpush1.msra.mxu0 0.0
    %107 = vmatprep.subr.mxu0 0.0
    %108 = vmatpush1.msra.mxu0 0.0
    %109 = vmatprep.subr.mxu0 0.0
    %110 = vmatpush1.msra.mxu0 0.0
    %111 = vmatprep.subr.mxu0 0.0
    %112 = vmatpush1.msra.mxu0 0.0
    %113 = vmatprep.subr.mxu0 0.0
    %114 = vmatpush1.msra.mxu0 0.0
    %115 = vmatprep.subr.mxu0 0.0
    %116 = vmatpush1.msra.mxu0 0.0
    %117 = vmatprep.subr.mxu0 0.0
    %118 = vmatpush1.msra.mxu0 0.0
    %119 = vmatprep.subr.mxu0 0.0
    %120 = vmatpush1.msra.mxu0 0.0
    %121 = vmatprep.subr.mxu0 0.0
    %122 = vmatpush1.msra.mxu0 0.0
    %123 = vmatprep.subr.mxu0 0.0
    %124 = vmatpush1.msra.mxu0 0.0
    %125 = vmatprep.subr.mxu0 0.0
    %126 = vmatpush1.msra.mxu0 0.0
    %127 = vmatprep.subr.mxu0 0.0
    %128 = vmatpush1.msra.mxu0 0.0
    %129 = vmatprep.subr.mxu0 0.0
    %130 = vmatpush1.msra.mxu0 0.0
    %131 = vmatprep.subr.mxu0 0.0
    %132 = vmatpush1.msra.mxu0 0.0
    %133 = vmatprep.subr.mxu0 0.0
    %134 = vmatpush1.msra.mxu0 0.0
    %135 = vmatprep.mubr.f32.mxu0 0.0
    %136 = vmatmul.mubr.f32.gmra.mrb[0].mxu0 %v66
    %v137 = vpop.f32.mrb[0].mxu0
    %v138 = vadd.f32 %v62, %v137
    %v139 = vpop.f32.mrb[0].mxu0
    %140 = vmatprep.mubr.f32.mxu0 0.0
    %141 = vmatmul.mubr.f32.gmra.mrb[0].mxu0 %v69
    %v142 = vpop.f32.mrb[0].mxu0
    %v143 = vadd.f32 %v63, %v142
    %v144 = vpop.f32.mrb[0].mxu0
    %145 = vdwg.mxu0
    %vm146 = vcmask 523264
    %147 = vst.msk [vmem:[#allocation8] sm:$0xff] %vm146, %v138
    %148 = vst.msk [vmem:[#allocation8 + $0x8] sm:$0xff] %vm146, %v143
    // Predicated region
    $region26: #{tpu_custom_call.1} parent=1 // pred_check
      _
    $region27: #{tpu_custom_call.1} parent=1 // pred_check_branch
      %150 = sbr.rel (0) target = $region29
    $region28: #{tpu_custom_call.1} parent=1 // pred_region
      %s152 = ssub.s32 256, 256
      %153 = vsyncadd [#allocation4], %s152
      %s154 = sshll.u32 [#allocation8], 4
      %s155 = int_to_ptr.vmem [resolvable:$true] %s154
      %160 = dma.vmem_to_hbm [thread:$0]  %s155, 256, %s3, [#allocation4], 128, 128, 8
    $region29: #{tpu_custom_call.1} parent=1 // pred_fallthru
      _
    // Predicated region
    $region30: #{tpu_custom_call.1} parent=1 // pred_check
      _
    $region31: #{tpu_custom_call.1} parent=1 // pred_check_branch
      %162 = sbr.rel (0) target = $region33
    $region32: #{tpu_custom_call.1} parent=1 // pred_region
      %163 = dma.done [#allocation4], 256
    $region33: #{tpu_custom_call.1} parent=1 // pred_fallthru
      _
    %164 = vsyncpa [#allocation3], 1
    %165 = vsyncpa [#allocation6], 1
    %166 = vsyncpa [#allocation4], 1

</llo_original>
